<compile_context>
chip_gen: v7x
topology: tpu7x:2x2x1
jax: 0.10.0
libtpu: 0.0.40
codegen_flags: <defaults>
</compile_context>

<pallas_src>
import jax
import jax.numpy as jnp
from jax.experimental import pallas as pl
from jax.experimental.pallas import tpu as pltpu

HIDDEN = 256  # nn.Linear(state_dim, 256)


def _actorh_fwd_kernel(x_ref, w_ref, b_ref, o_ref):
    # MXU matmul (f32 accumulate) + bias add + ReLU epilogue (VPU).
    acc = jnp.dot(x_ref[...], w_ref[...], preferred_element_type=jnp.float32)
    acc = acc + b_ref[...]                       # (tm, 256) + (1, 256) broadcast
    o_ref[...] = jnp.maximum(acc, 0.0).astype(o_ref.dtype)


def _cost_estimate(b, s, h, itemsize=4):
    return pl.CostEstimate(
        flops=2 * b * s * h,
        transcendentals=0,
        bytes_accessed=itemsize * (b * s + s * h + h + b * h),
    )


def actorh_forward(state, w1, b1, *, block_b=256, use_bf16=False):
    """state: (B, state_dim); w1: (state_dim, 256) (pre-transposed); b1: (256,).

    block_b: batch tile for the large-batch path (128 is a good choice on
             v5e, 256 on v6e/v7x). Small batches take a gridless single-tile
             path regardless.
    """
    B, S = state.shape
    assert w1.shape == (S, HIDDEN)
    assert b1.shape == (HIDDEN,)
    out_dtype = state.dtype
    b1_2d = b1.reshape(1, HIDDEN)

    if use_bf16:
        # bf16 operands, f32 accumulation (preferred_element_type in kernel).
        state = state.astype(jnp.bfloat16)
        w1 = w1.astype(jnp.bfloat16)

    block_b = max(8, (block_b // 8) * 8)  # keep tile height sublane-aligned

    if B <= block_b:
        # ---- Single-tile, gridless path (typical RL step sizes) ----------
        Bp = ((B + 7) // 8) * 8  # pad to full f32 sublane tiles -> unmasked vst
        xp = state if Bp == B else jnp.pad(state, ((0, Bp - B), (0, 0)))
        out = pl.pallas_call(
            _actorh_fwd_kernel,
            out_shape=jax.ShapeDtypeStruct((Bp, HIDDEN), out_dtype),
            in_specs=[
                pl.BlockSpec(memory_space=pltpu.MemorySpace.VMEM),
                pl.BlockSpec(memory_space=pltpu.MemorySpace.VMEM),
                pl.BlockSpec(memory_space=pltpu.MemorySpace.VMEM),
            ],
            out_specs=pl.BlockSpec(memory_space=pltpu.MemorySpace.VMEM),
            cost_estimate=_cost_estimate(Bp, S, HIDDEN),
        )(xp, w1, b1_2d)
        return out if Bp == B else out[:B]

    # ---- Large-batch path: tile the batch, parallel grid axis ------------
    Bp = ((B + block_b - 1) // block_b) * block_b
    xp = state if Bp == B else jnp.pad(state, ((0, Bp - B), (0, 0)))
    out = pl.pallas_call(
        _actorh_fwd_kernel,
        out_shape=jax.ShapeDtypeStruct((Bp, HIDDEN), out_dtype),
        grid=(Bp // block_b,),
        in_specs=[
            pl.BlockSpec((block_b, S), lambda i: (i, 0)),
            pl.BlockSpec((S, HIDDEN), lambda i: (0, 0)),   # weight VMEM-resident
            pl.BlockSpec((1, HIDDEN), lambda i: (0, 0)),   # bias VMEM-resident
        ],
        out_specs=pl.BlockSpec((block_b, HIDDEN), lambda i: (i, 0)),
        compiler_params=pltpu.CompilerParams(
            dimension_semantics=("parallel",)),            # megacore / v7x 2xTC
        cost_estimate=_cost_estimate(Bp, S, HIDDEN),
    )(xp, w1, b1_2d)
    return out if Bp == B else out[:B]


def init_params(key, state_dim):
    # Deterministic init mimicking PyTorch nn.Linear default:
    # U(-1/sqrt(fan_in), 1/sqrt(fan_in)) for both weight and bias.
    kw, kb = jax.random.split(key)
    bound = 1.0 / jnp.sqrt(jnp.float32(state_dim))
    w1 = jax.random.uniform(kw, (state_dim, HIDDEN), jnp.float32, -bound, bound)
    b1 = jax.random.uniform(kb, (HIDDEN,), jnp.float32, -bound, bound)
    return w1, b1


if __name__ == "__main__":
    key = jax.random.PRNGKey(0)
    k_x, k_p = jax.random.split(key)

    state_dim = 32
    w1, b1 = init_params(k_p, state_dim)

    def ref_fwd(x):
        return jnp.maximum(x @ w1 + b1[None, :], 0.0)

    # 1) Typical RL batch: exercises the gridless single-tile path.
    state8 = jax.random.normal(k_x, (8, state_dim), jnp.float32)
    out8 = jax.block_until_ready(actorh_forward(state8, w1, b1))
    assert out8.shape == (8, HIDDEN)
    assert jnp.allclose(out8, ref_fwd(state8), atol=1e-5, rtol=1e-5)

    # 2) Non-sublane-aligned batch: exercises padding in the wrapper.
    state5 = state8[:5]
    out5 = jax.block_until_ready(actorh_forward(state5, w1, b1))
    assert out5.shape == (5, HIDDEN)
    assert jnp.allclose(out5, ref_fwd(state5), atol=1e-5, rtol=1e-5)

    # 3) Vectorized-rollout batch: exercises the tiled, parallel-grid path.
    state_big = jax.random.normal(k_x, (384, state_dim), jnp.float32)
    out_big = jax.block_until_ready(
        actorh_forward(state_big, w1, b1, block_b=128))
    assert out_big.shape == (384, HIDDEN)
    assert jnp.allclose(out_big, ref_fwd(state_big), atol=1e-5, rtol=1e-5)

    print("KERNEL_OK")
</pallas_src>

<mosaic_0001>
module attributes {stable_mosaic.version = 11 : i64} {
  func.func @_actorh_fwd_kernel(%arg0: memref<8x32xf32, #tpu.memory_space<vmem>>, %arg1: memref<32x256xf32, #tpu.memory_space<vmem>>, %arg2: memref<1x256xf32, #tpu.memory_space<vmem>>, %arg3: memref<8x256xf32, #tpu.memory_space<vmem>>) attributes {dimension_semantics = [], scalar_prefetch = 0 : i64, scratch_operands = 0 : i64, tpu.core_type = #tpu.core_type<tc>} {
    %c0 = arith.constant 0 : index
    %c0_0 = arith.constant 0 : index
    %0 = vector.load %arg0[%c0, %c0_0] : memref<8x32xf32, #tpu.memory_space<vmem>>, vector<8x32xf32>
    %c0_1 = arith.constant 0 : index
    %c0_2 = arith.constant 0 : index
    %1 = vector.load %arg1[%c0_1, %c0_2] : memref<32x256xf32, #tpu.memory_space<vmem>>, vector<32x256xf32>
    %cst = arith.constant dense<0.000000e+00> : vector<8x256xf32>
    %2 = tpu.matmul %0, %1, %cst {dimension_numbers = #tpu.dot_dimension_numbers<[1], [0], [0], [1], [0, 0, 1, 1], [], []>} : vector<8x32xf32>, vector<32x256xf32>, vector<8x256xf32> -> vector<8x256xf32>
    %c0_3 = arith.constant 0 : index
    %c0_4 = arith.constant 0 : index
    %3 = vector.load %arg2[%c0_3, %c0_4] : memref<1x256xf32, #tpu.memory_space<vmem>>, vector<1x256xf32>
    %4 = vector.broadcast %3 : vector<1x256xf32> to vector<8x256xf32>
    %5 = arith.addf %2, %4 : vector<8x256xf32>
    %cst_5 = arith.constant 0.000000e+00 : f32
    %6 = vector.broadcast %cst_5 : f32 to vector<8x256xf32>
    %7 = arith.maximumf %5, %6 : vector<8x256xf32>
    %c0_6 = arith.constant 0 : index
    %c0_7 = arith.constant 0 : index
    %8 = vector.load %arg3[%c0_6, %c0_7] : memref<8x256xf32, #tpu.memory_space<vmem>>, vector<8x256xf32>
    tpu.vector_store %arg3[%c0_6, %c0_7], %7 {strides = array<i32>} : memref<8x256xf32, #tpu.memory_space<vmem>>, vector<8x256xf32>,
    return
  }
}

</mosaic_0001>

<llo_original>
// kernel: tpu_custom_call.1
$region0: #{tpu_custom_call.1}
  #allocation0 [shape = 'u32[]', space=smem, size = 0x4, offset = 0x4, fixed_abs, tag = 'smem constant byte address 0x4 - core index']
  #allocation1 [shape = 'u32[144,128]{1,0:T(1,128)}', space=vmem, size = 0x12000, scoped, tag = 'internal scratch']
  %s0 = inlined_call_operand.hbm [shape: f32[8,32], index: 0, kind: input, shape index: {}]
  %s1 = inlined_call_operand.hbm [shape: f32[32,256], index: 1, kind: input, shape index: {}]
  %s2 = inlined_call_operand.vmem [shape: f32[1,256], index: 2, kind: input, shape index: {}]
  %s3 = inlined_call_operand.hbm [shape: f32[8,256], index: 3, kind: output, shape index: {}]
  %s4 = sld [smem:[#allocation0]]
  $region30: #{tpu_custom_call.1} parent=0
    _
  %s6 = ssub.s32 1, %s4
  %s7 = scalar_select 0, %s6, %s4
  $region1: #{tpu_custom_call.1} parent=0
    #allocation2 [shape = 'u8[4096]{0}', space=vmem, size = 0x1000, scoped, tag = 'input window, operand 0, single buffered']
    #allocation3 [shape = 's32[1]{0}', space=sflag, size = 0x4, scoped, tag = 'scoped memory for tpu_custom_call.1']
    #allocation4 [shape = 's32[1]{0}', space=sflag, size = 0x4, scoped, tag = 'scoped memory for tpu_custom_call.1']
    #allocation5 [shape = 'u8[32768]{0}', space=vmem, size = 0x8000, scoped, tag = 'input window, operand 1, single buffered']
    #allocation6 [shape = 's32[1]{0}', space=sflag, size = 0x4, scoped, tag = 'scoped memory for tpu_custom_call.1']
    #allocation7 [shape = 'u8[8192]{0}', space=vmem, size = 0x2000, scoped, tag = 'output window, operand 0, single buffered']
    %8 = vsyncpa [#allocation3], 0
    %9 = vsyncpa [#allocation6], 0
    %10 = vsyncpa [#allocation4], 0
    // Predicated region
    $region2: #{tpu_custom_call.1} parent=1 // pred_check
      _
    $region3: #{tpu_custom_call.1} parent=1 // pred_check_branch
      %12 = sbr.rel (0) target = $region5
    $region4: #{tpu_custom_call.1} parent=1 // pred_region
      %s14 = ssub.s32 128, 128
      %15 = vsyncadd [#allocation3], %s14
      %s17 = sshll.u32 [#allocation2], 4
      %s18 = int_to_ptr.vmem [resolvable:$true] %s17
      %20 = dma.hbm_to_vmem [thread:$0]  %s0, 128, %s18, [#allocation3]
    $region5: #{tpu_custom_call.1} parent=1 // pred_fallthru
      _
    // Predicated region
    $region6: #{tpu_custom_call.1} parent=1 // pred_check
      _
    $region7: #{tpu_custom_call.1} parent=1 // pred_check_branch
      %22 = sbr.rel (0) target = $region9
    $region8: #{tpu_custom_call.1} parent=1 // pred_region
      %s24 = ssub.s32 1024, 1024
      %25 = vsyncadd [#allocation6], %s24
      %s26 = sshll.u32 [#allocation5], 4
      %s27 = int_to_ptr.vmem [resolvable:$true] %s26
      %32 = dma.hbm_to_vmem [thread:$0]  %s1, 1024, %s27, [#allocation6], 256, 256, 16
    $region9: #{tpu_custom_call.1} parent=1 // pred_fallthru
      _
    // Predicated region
    $region10: #{tpu_custom_call.1} parent=1 // pred_check
      _
    $region11: #{tpu_custom_call.1} parent=1 // pred_check_branch
      %34 = sbr.rel (0) target = $region13
    $region12: #{tpu_custom_call.1} parent=1 // pred_region
      _
    $region13: #{tpu_custom_call.1} parent=1 // pred_fallthru
      _
    // Predicated region
    $region14: #{tpu_custom_call.1} parent=1 // pred_check
      _
    $region15: #{tpu_custom_call.1} parent=1 // pred_check_branch
      %36 = sbr.rel (0) target = $region17
    $region16: #{tpu_custom_call.1} parent=1 // pred_region
      %37 = dma.done [#allocation3], 128
    $region17: #{tpu_custom_call.1} parent=1 // pred_fallthru
      _
    // Predicated region
    $region18: #{tpu_custom_call.1} parent=1 // pred_check
      _
    $region19: #{tpu_custom_call.1} parent=1 // pred_check_branch
      %39 = sbr.rel (0) target = $region21
    $region20: #{tpu_custom_call.1} parent=1 // pred_region
      %40 = dma.done [#allocation6], 1024
    $region21: #{tpu_custom_call.1} parent=1 // pred_fallthru
      _
    %v41 = vld [vmem:[#allocation2] sm:$0xff]
    %v42 = vld [vmem:[#allocation5] sm:$0xff]
    %v43 = vld [vmem:[#allocation5 + $0x8] sm:$0xff]
    %v44 = vld [vmem:[#allocation5 + $0x10] sm:$0xff]
    %v45 = vld [vmem:[#allocation5 + $0x18] sm:$0xff]
    %v46 = vld [vmem:[#allocation5 + $0x20] sm:$0xff]
    %v47 = vld [vmem:[#allocation5 + $0x28] sm:$0xff]
    %v48 = vld [vmem:[#allocation5 + $0x30] sm:$0xff]
    %v49 = vld [vmem:[#allocation5 + $0x38] sm:$0xff]
    %v50 = vld [vmem:[%s2] sm:$0x3]
    %v52 = vlaneseq
    %v53 = vshrl.u32 %v52, 7
    %v54 = vsub.s32 0, %v53
    %v55 = vrot.slane %v50, %v54
    %v56 = vlaneseq
    %v57 = vshrl.u32 %v56, 7
    %v58 = vsub.s32 1, %v57
    %v59 = vrot.slane %v50, %v58
    %vm62 = vcmask 261120
    %v64 = vsel %vm62, %v41, 0
    %66 = vmatprep.subr.mxu0 %v43
    %67 = vmatpush1.msra.mxu0 %v42
    %68 = vmatprep.subr.mxu0 %v45
    %69 = vmatpush1.msra.mxu0 %v44
    %70 = vmatprep.subr.mxu0 %v47
    %71 = vmatpush1.msra.mxu0 %v46
    %72 = vmatprep.subr.mxu0 %v49
    %73 = vmatpush1.msra.mxu0 %v48
    %74 = vmatprep.subr.mxu0 0.0
    %75 = vmatpush1.msra.mxu0 0.0
    %76 = vmatprep.subr.mxu0 0.0
    %77 = vmatpush1.msra.mxu0 0.0
    %78 = vmatprep.subr.mxu0 0.0
    %79 = vmatpush1.msra.mxu0 0.0
    %80 = vmatprep.subr.mxu0 0.0
    %81 = vmatpush1.msra.mxu0 0.0
    %82 = vmatprep.subr.mxu0 0.0
    %83 = vmatpush1.msra.mxu0 0.0
    %84 = vmatprep.subr.mxu0 0.0
    %85 = vmatpush1.msra.mxu0 0.0
    %86 = vmatprep.subr.mxu0 0.0
    %87 = vmatpush1.msra.mxu0 0.0
    %88 = vmatprep.subr.mxu0 0.0
    %89 = vmatpush1.msra.mxu0 0.0
    %90 = vmatprep.subr.mxu0 0.0
    %91 = vmatpush1.msra.mxu0 0.0
    %92 = vmatprep.subr.mxu0 0.0
    %93 = vmatpush1.msra.mxu0 0.0
    %94 = vmatprep.subr.mxu0 0.0
    %95 = vmatpush1.msra.mxu0 0.0
    %96 = vmatprep.subr.mxu0 0.0
    %97 = vmatpush1.msra.mxu0 0.0
    %98 = vmatprep.subr.mxu0 0.0
    %99 = vmatpush1.msra.mxu0 0.0
    %100 = vmatprep.subr.mxu0 0.0
    %101 = vmatpush1.msra.mxu0 0.0
    %102 = vmatprep.subr.mxu0 0.0
    %103 = vmatpush1.msra.mxu0 0.0
    %104 = vmatprep.subr.mxu0 0.0
    %105 = vmatpush1.msra.mxu0 0.0
    %106 = vmatprep.subr.mxu0 0.0
    %107 = vmatpush1.msra.mxu0 0.0
    %108 = vmatprep.subr.mxu0 0.0
    %109 = vmatpush1.msra.mxu0 0.0
    %110 = vmatprep.subr.mxu0 0.0
    %111 = vmatpush1.msra.mxu0 0.0
    %112 = vmatprep.subr.mxu0 0.0
    %113 = vmatpush1.msra.mxu0 0.0
    %114 = vmatprep.subr.mxu0 0.0
    %115 = vmatpush1.msra.mxu0 0.0
    %116 = vmatprep.subr.mxu0 0.0
    %117 = vmatpush1.msra.mxu0 0.0
    %118 = vmatprep.subr.mxu0 0.0
    %119 = vmatpush1.msra.mxu0 0.0
    %120 = vmatprep.subr.mxu0 0.0
    %121 = vmatpush1.msra.mxu0 0.0
    %122 = vmatprep.subr.mxu0 0.0
    %123 = vmatpush1.msra.mxu0 0.0
    %124 = vmatprep.subr.mxu0 0.0
    %125 = vmatpush1.msra.mxu0 0.0
    %126 = vmatprep.subr.mxu0 0.0
    %127 = vmatpush1.msra.mxu0 0.0
    %128 = vmatprep.subr.mxu0 0.0
    %129 = vmatpush1.msra.mxu0 0.0
    %130 = vmatprep.mubr.f32.mxu0 0.0
    %131 = vmatmul.mubr.f32.gmra.mrb[0].mxu0 %v64
    %v132 = vpop.f32.mrb[0].mxu0
    %v133 = vadd.f32 %v55, %v132
    %v134 = vpop.f32.mrb[0].mxu0
    %v135 = vadd.f32 %v59, %v134
    %136 = vdwg.mxu0
    %v137 = vmax.f32 %v133, 0.0
    %v138 = vmax.f32 %v135, 0.0
    %139 = vst [vmem:[#allocation7] sm:$0xff] %v137
    %140 = vst [vmem:[#allocation7 + $0x8] sm:$0xff] %v138
    // Predicated region
    $region22: #{tpu_custom_call.1} parent=1 // pred_check
      _
    $region23: #{tpu_custom_call.1} parent=1 // pred_check_branch
      %142 = sbr.rel (0) target = $region25
    $region24: #{tpu_custom_call.1} parent=1 // pred_region
      %s144 = ssub.s32 256, 256
      %145 = vsyncadd [#allocation4], %s144
      %s147 = sshll.u32 [#allocation7], 4
      %s148 = int_to_ptr.vmem [resolvable:$true] %s147
      %150 = dma.vmem_to_hbm [thread:$0]  %s148, 256, %s3, [#allocation4]
    $region25: #{tpu_custom_call.1} parent=1 // pred_fallthru
      _
    // Predicated region
    $region26: #{tpu_custom_call.1} parent=1 // pred_check
      _
    $region27: #{tpu_custom_call.1} parent=1 // pred_check_branch
      %152 = sbr.rel (0) target = $region29
    $region28: #{tpu_custom_call.1} parent=1 // pred_region
      %153 = dma.done [#allocation4], 256
    $region29: #{tpu_custom_call.1} parent=1 // pred_fallthru
      _
    %154 = vsyncpa [#allocation3], 1
    %155 = vsyncpa [#allocation6], 1
    %156 = vsyncpa [#allocation4], 1

</llo_original>
